<compile_context>
chip_gen: v7x
topology: tpu7x:2x2x1
jax: 0.10.0
libtpu: 0.0.40
codegen_flags: <defaults>
</compile_context>

<pallas_src>
import functools
import inspect

import jax
import jax.numpy as jnp
from jax.experimental import pallas as pl
from jax.experimental.pallas import tpu as pltpu


# ----------------------------------------------------------------------------
# Pallas kernel: one grid step = one batch-tile of full-height images.
#   x_ref: (BT*H, W*Cin)      lane-dense flattened NHWC rows
#   w_ref: (3, W*Cin, W*Cout) per-kh banded weights (kw taps + W halo folded)
#   b_ref: (1, W*Cout)        bias tiled along W
#   o_ref: (BT*H, W*Cout)
# out[r] = A0[r-1] + A1[r] + A2[r+1] + bias with A_kh = x @ w_ref[kh]; the
# r-1 / r+1 neighbours are taken within each image (zero halo at image edges).
# ----------------------------------------------------------------------------
def _conv3x3_kernel(x_ref, w_ref, b_ref, o_ref, *, rows_per_image):
    m = x_ref.shape[0]
    x = x_ref[...]
    # Three MXU dots with f32 accumulation (no im2row concat temp).
    a0 = jnp.dot(x, w_ref[0], preferred_element_type=jnp.float32)  # top tap
    a1 = jnp.dot(x, w_ref[1], preferred_element_type=jnp.float32)  # centre tap
    a2 = jnp.dot(x, w_ref[2], preferred_element_type=jnp.float32)  # bottom tap

    # Row index within its image; image-boundary rows get the zero H-halo.
    ridx = jax.lax.broadcasted_iota(jnp.int32, a1.shape, 0) % rows_per_image
    # Sublane rotations run on the XLU (essentially free); the masks zero the
    # wrapped rows, which also makes the per-image halo correct when several
    # images are folded into one tile.
    a0s = jnp.where(ridx == 0, 0.0, pltpu.roll(a0, shift=1, axis=0))
    a2s = jnp.where(ridx == rows_per_image - 1, 0.0,
                    pltpu.roll(a2, shift=m - 1, axis=0))

    acc = a0s + a1 + a2s + b_ref[...].astype(jnp.float32)
    o_ref[...] = acc.astype(o_ref.dtype)


# ----------------------------------------------------------------------------
# Weight preprocessing (done once, outside the per-step hot path).
# ----------------------------------------------------------------------------
def _build_banded_weights(weight_hwio, W):
    """Per-kh banded matrices folding the 3 kw taps + the zero W-halo.

    Returns (3, W*Cin, W*Cout) with
      out[kh, win*Cin + ci, wout*Cout + co] =
          weight[kh, win - wout + 1, ci, co]  if |win - wout| <= 1 else 0.
    """
    KH, KW, Cin, Cout = weight_hwio.shape
    win = jnp.arange(W)[:, None]     # input column
    wout = jnp.arange(W)[None, :]    # output column
    kw = win - wout + 1
    valid = (kw >= 0) & (kw < KW)
    kw_safe = jnp.clip(kw, 0, KW - 1)
    big = weight_hwio[:, kw_safe, :, :]                      # (KH, Win, Wout, Cin, Cout)
    big = jnp.where(valid[None, :, :, None, None], big, 0.0)
    big = jnp.transpose(big, (0, 1, 3, 2, 4))                # (KH, Win, Cin, Wout, Cout)
    return big.reshape(KH, W * Cin, W * Cout)


def _pick_batch_tile(B, H, *, target_rows=256, max_rows=1024):
    """Images per grid step: fold batch rows until the matmul M dim is
    MXU-sized (~256 rows) or the VMEM row cap is hit.  Remaining batch tiles
    form the (parallel) grid axis, which is what feeds both v7x TensorCores."""
    best = 1
    for bt in range(1, B + 1):
        if B % bt:
            continue
        if bt * H > max_rows and bt > 1:
            break
        best = bt
        if bt * H >= target_rows:
            break
    return best


def conv3x3_same_flat(y_flat, banded_w, bias_row, *, H, batch_tile=None):
    """3x3 stride-1 'same' conv on flattened NHWC rows.

    y_flat: (B*H, W*Cin), rows ordered batch-major then image row, with (W, C)
    flattened onto the lane axis.  Returns (B*H, W*Cout) in the same layout.
    """
    rows, WCin = y_flat.shape
    _, _, WCout = banded_w.shape
    assert rows % H == 0, "row count must be a multiple of the image height"
    B = rows // H
    bt = batch_tile if batch_tile is not None else _pick_batch_tile(B, H)
    assert B % bt == 0, "batch tile must divide the batch"
    n_tiles = B // bt
    tile_rows = bt * H
    assert n_tiles == 1 or tile_rows % 8 == 0, (
        "per-tile row count must be sublane (8) aligned when tiling the batch")

    # VMEM budget from the actual per-step footprint (double-buffered blocks
    # + f32 temporaries), with 2x headroom; stays well under v7x's 64 MiB.
    elt = y_flat.dtype.itemsize
    x_blk = tile_rows * WCin * elt
    o_blk = tile_rows * WCout * elt
    w_bytes = banded_w.size * banded_w.dtype.itemsize
    b_bytes = bias_row.size * bias_row.dtype.itemsize
    need = 2 * (x_blk + o_blk + w_bytes + b_bytes) + 6 * tile_rows * WCout * 4
    vmem_limit = int(min(64 * 2**20, max(8 * 2**20, 2 * need)))

    kernel = functools.partial(_conv3x3_kernel, rows_per_image=H)
    return pl.pallas_call(
        kernel,
        out_shape=jax.ShapeDtypeStruct((rows, WCout), y_flat.dtype),
        grid_spec=pltpu.PrefetchScalarGridSpec(
            num_scalar_prefetch=0,
            grid=(n_tiles,),
            in_specs=[
                pl.BlockSpec((tile_rows, WCin), lambda i: (i, 0)),
                # Grid-invariant weight/bias.  For production W*C on v7x:
                # single-buffer these (pipeline_mode=pl.Buffered(1)) and tile
                # the banded weight's K/N dims to stay inside 64 MiB VMEM.
                pl.BlockSpec((3, WCin, WCout), lambda i: (0, 0, 0)),
                pl.BlockSpec((1, WCout), lambda i: (0, 0)),
            ],
            out_specs=pl.BlockSpec((tile_rows, WCout), lambda i: (i, 0)),
        ),
        compiler_params=pltpu.CompilerParams(
            dimension_semantics=("parallel",),
            vmem_limit_bytes=vmem_limit),
    )(y_flat, banded_w, bias_row)


# ----------------------------------------------------------------------------
# One-time layout boundary converters (the ODE state stays flat in between).
# ----------------------------------------------------------------------------
def nchw_to_flat(y_nchw):
    B, C, H, W = y_nchw.shape
    return jnp.transpose(y_nchw, (0, 2, 3, 1)).reshape(B * H, W * C)


def flat_to_nchw(y_flat, B, C, H, W):
    return jnp.transpose(y_flat.reshape(B, H, W, C), (0, 3, 1, 2))


# ----------------------------------------------------------------------------
# Inner "module": Conv2d(C, C, 3, padding=1) equivalent; forward takes (y,).
# ----------------------------------------------------------------------------
class Conv2dSame:
    def __init__(self, in_channels, out_channels, H, W, key):
        k_w, k_b = jax.random.split(key)
        fan_in = in_channels * 3 * 3
        bound = 1.0 / (fan_in ** 0.5)
        # HWIO weight layout; deterministic PyTorch-style uniform init.
        self.weight = jax.random.uniform(
            k_w, (3, 3, in_channels, out_channels),
            minval=-bound, maxval=bound, dtype=jnp.float32)
        self.bias = jax.random.uniform(
            k_b, (out_channels,), minval=-bound, maxval=bound,
            dtype=jnp.float32)
        self.H, self.W = H, W
        self.in_channels, self.out_channels = in_channels, out_channels
        # Precomputed once (not per diffeq evaluation): banded per-kh weights
        # and the lane-tiled bias row.  (For v6e/v7x production, cast these +
        # the activations to bf16 at the kernel boundary; kept f32 here so the
        # f32 reference check below stays tight.)
        self.banded_w = _build_banded_weights(self.weight, W)
        self.bias_row = jnp.tile(self.bias, W).reshape(1, W * out_channels)

    def forward(self, y):  # single-argument forward, like nn.Conv2d
        return conv3x3_same_flat(y, self.banded_w, self.bias_row, H=self.H)

    def __call__(self, y):
        return self.forward(y)


# ----------------------------------------------------------------------------
# DiffEqWrapper: same signature-based dispatch as the PyTorch module.
# ----------------------------------------------------------------------------
class DiffEqWrapper:
    def __init__(self, module):
        self.module = module
        n_params = len(inspect.signature(self.module.forward).parameters)
        if n_params == 1:
            self.diffeq = lambda t, y: self.module(y)
        elif n_params == 2:
            self.diffeq = self.module
        else:
            raise ValueError(
                "Differential equation needs to either take (t, y) or (y,) "
                "as input.")

    def forward(self, t, y):
        return self.diffeq(t, y)

    def __call__(self, t, y):
        return self.forward(t, y)

    def __repr__(self):
        return repr(self.diffeq)


# ----------------------------------------------------------------------------
if __name__ == "__main__":
    key = jax.random.PRNGKey(0)
    k_mod, k_y = jax.random.split(key)

    # W * C = 128 -> the kernel's lane axis is exactly one full vreg width.
    B, C, H, W = 2, 4, 32, 32
    inner = Conv2dSame(C, C, H, W, k_mod)
    wrapper = DiffEqWrapper(inner)

    y_nchw = jax.random.normal(k_y, (B, C, H, W), dtype=jnp.float32)
    # One-time conversion into the resident flat layout the diffeq runs in.
    y_flat = nchw_to_flat(y_nchw)
    t = jnp.float32(0.5)  # ignored by the 1-arg inner module, per wrapper semantics

    out_flat = wrapper.forward(t, y_flat)
    out_flat = jax.block_until_ready(out_flat)
    out = flat_to_nchw(out_flat, B, C, H, W)

    # Reference: XLA conv with nn.Conv2d semantics (NCHW, 'same', + bias).
    ref = jax.lax.conv_general_dilated(
        y_nchw, inner.weight, window_strides=(1, 1), padding="SAME",
        dimension_numbers=("NCHW", "HWIO", "NCHW"),
    ) + inner.bias[None, :, None, None]
    assert out.shape == (B, C, H, W)
    err = float(jnp.max(jnp.abs(out - ref)))
    assert jnp.allclose(out, ref, atol=2e-4, rtol=2e-4), err
    print("KERNEL_OK")
</pallas_src>

<mosaic_0001>
module attributes {stable_mosaic.version = 11 : i64} {
  func.func @_conv3x3_kernel(%arg0: i32, %arg1: memref<64x128xf32, #tpu.memory_space<vmem>>, %arg2: memref<3x128x128xf32, #tpu.memory_space<vmem>>, %arg3: memref<1x128xf32, #tpu.memory_space<vmem>>, %arg4: memref<64x128xf32, #tpu.memory_space<vmem>>) attributes {dimension_semantics = [#tpu.dimension_semantics<parallel>], iteration_bounds = array<i64: 1>, scalar_prefetch = 0 : i64, scratch_operands = 0 : i64, tpu.core_type = #tpu.core_type<tc>, window_params = [{transform_indices = @transform_0, window_bounds = array<i64: 64, 128>}, {pipeline_mode = #tpu.pipeline_mode<synchronous>, transform_indices = @transform_1, window_bounds = array<i64: 3, 128, 128>}, {pipeline_mode = #tpu.pipeline_mode<synchronous>, transform_indices = @transform_2, window_bounds = array<i64: 1, 128>}, {transform_indices = @transform_3, window_bounds = array<i64: 64, 128>}]} {
    %c0 = arith.constant 0 : index
    %c0_0 = arith.constant 0 : index
    %0 = vector.load %arg1[%c0, %c0_0] : memref<64x128xf32, #tpu.memory_space<vmem>>, vector<64x128xf32>
    %c0_1 = arith.constant 0 : index
    %c0_2 = arith.constant 0 : index
    %c0_3 = arith.constant 0 : index
    %1 = vector.load %arg2[%c0_1, %c0_2, %c0_3] : memref<3x128x128xf32, #tpu.memory_space<vmem>>, vector<1x128x128xf32>
    %2 = vector.shape_cast %1 : vector<1x128x128xf32> to vector<128x128xf32>
    %cst = arith.constant dense<0.000000e+00> : vector<64x128xf32>
    %3 = tpu.matmul %0, %2, %cst {dimension_numbers = #tpu.dot_dimension_numbers<[1], [0], [0], [1], [0, 0, 1, 1], [], []>} : vector<64x128xf32>, vector<128x128xf32>, vector<64x128xf32> -> vector<64x128xf32>
    %c1 = arith.constant 1 : index
    %c0_4 = arith.constant 0 : index
    %c0_5 = arith.constant 0 : index
    %4 = vector.load %arg2[%c1, %c0_4, %c0_5] : memref<3x128x128xf32, #tpu.memory_space<vmem>>, vector<1x128x128xf32>
    %5 = vector.shape_cast %4 : vector<1x128x128xf32> to vector<128x128xf32>
    %cst_6 = arith.constant dense<0.000000e+00> : vector<64x128xf32>
    %6 = tpu.matmul %0, %5, %cst_6 {dimension_numbers = #tpu.dot_dimension_numbers<[1], [0], [0], [1], [0, 0, 1, 1], [], []>} : vector<64x128xf32>, vector<128x128xf32>, vector<64x128xf32> -> vector<64x128xf32>
    %c2 = arith.constant 2 : index
    %c0_7 = arith.constant 0 : index
    %c0_8 = arith.constant 0 : index
    %7 = vector.load %arg2[%c2, %c0_7, %c0_8] : memref<3x128x128xf32, #tpu.memory_space<vmem>>, vector<1x128x128xf32>
    %8 = vector.shape_cast %7 : vector<1x128x128xf32> to vector<128x128xf32>
    %cst_9 = arith.constant dense<0.000000e+00> : vector<64x128xf32>
    %9 = tpu.matmul %0, %8, %cst_9 {dimension_numbers = #tpu.dot_dimension_numbers<[1], [0], [0], [1], [0, 0, 1, 1], [], []>} : vector<64x128xf32>, vector<128x128xf32>, vector<64x128xf32> -> vector<64x128xf32>
    %10 = tpu.iota {dimensions = array<i32: 0>} : vector<64x128xi32>
    %c32_i32 = arith.constant 32 : i32
    %c0_i32 = arith.constant 0 : i32
    %11 = arith.cmpi eq, %c32_i32, %c0_i32 : i32
    %c1_i32 = arith.constant 1 : i32
    %12 = arith.select %11, %c1_i32, %c32_i32 : i32
    %13 = vector.broadcast %12 : i32 to vector<64x128xi32>
    %14 = arith.remsi %10, %13 : vector<64x128xi32>
    %c0_i32_10 = arith.constant 0 : i32
    %15 = vector.broadcast %c0_i32_10 : i32 to vector<64x128xi32>
    %16 = arith.cmpi ne, %14, %15 : vector<64x128xi32>
    %c0_i32_11 = arith.constant 0 : i32
    %17 = vector.broadcast %c0_i32_11 : i32 to vector<64x128xi32>
    %18 = arith.cmpi slt, %14, %17 : vector<64x128xi32>
    %c0_i32_12 = arith.constant 0 : i32
    %19 = arith.cmpi slt, %12, %c0_i32_12 : i32
    %20 = vector.broadcast %19 : i1 to vector<64x128xi1>
    %21 = vector.broadcast %20 : vector<64x128xi1> to vector<64x128xi1>
    %22 = arith.xori %18, %21 : vector<64x128xi1>
    %23 = arith.andi %22, %16 : vector<64x128xi1>
    %24 = vector.broadcast %12 : i32 to vector<64x128xi32>
    %25 = arith.addi %14, %24 : vector<64x128xi32>
    %26 = arith.select %23, %25, %14 : vector<64x128xi1>, vector<64x128xi32>
    %c0_i32_13 = arith.constant 0 : i32
    %27 = vector.broadcast %c0_i32_13 : i32 to vector<64x128xi32>
    %28 = arith.cmpi eq, %26, %27 : vector<64x128xi32>
    %c1_i32_14 = arith.constant 1 : i32
    %29 = tpu.dynamic_rotate %3 by %c1_i32_14 dim 0 : vector<64x128xf32>, i32 -> vector<64x128xf32>
    %cst_15 = arith.constant 0.000000e+00 : f32
    %30 = vector.broadcast %cst_15 : f32 to vector<64x128xf32>
    %31 = arith.select %28, %30, %29 : vector<64x128xi1>, vector<64x128xf32>
    %c31_i32 = arith.constant 31 : i32
    %32 = vector.broadcast %c31_i32 : i32 to vector<64x128xi32>
    %33 = arith.cmpi eq, %26, %32 : vector<64x128xi32>
    %c63_i32 = arith.constant 63 : i32
    %34 = tpu.dynamic_rotate %9 by %c63_i32 dim 0 : vector<64x128xf32>, i32 -> vector<64x128xf32>
    %cst_16 = arith.constant 0.000000e+00 : f32
    %35 = vector.broadcast %cst_16 : f32 to vector<64x128xf32>
    %36 = arith.select %33, %35, %34 : vector<64x128xi1>, vector<64x128xf32>
    %37 = arith.addf %31, %6 : vector<64x128xf32>
    %38 = arith.addf %37, %36 : vector<64x128xf32>
    %c0_17 = arith.constant 0 : index
    %c0_18 = arith.constant 0 : index
    %39 = vector.load %arg3[%c0_17, %c0_18] : memref<1x128xf32, #tpu.memory_space<vmem>>, vector<1x128xf32>
    %40 = vector.broadcast %39 : vector<1x128xf32> to vector<64x128xf32>
    %41 = arith.addf %38, %40 : vector<64x128xf32>
    %c0_19 = arith.constant 0 : index
    %c0_20 = arith.constant 0 : index
    %42 = vector.load %arg4[%c0_19, %c0_20] : memref<64x128xf32, #tpu.memory_space<vmem>>, vector<64x128xf32>
    tpu.vector_store %arg4[%c0_19, %c0_20], %41 {strides = array<i32>} : memref<64x128xf32, #tpu.memory_space<vmem>>, vector<64x128xf32>,
    return
  }
  func.func @transform_0(%arg0: i32) -> (i32, i32) {
    %c0_i32 = arith.constant 0 : i32
    %c0_i32_0 = arith.constant 0 : i32
    return %arg0, %c0_i32 : i32, i32
  }
  func.func @transform_1(%arg0: i32) -> (i32, i32, i32) {
    %c0_i32 = arith.constant 0 : i32
    %c0_i32_0 = arith.constant 0 : i32
    %c0_i32_1 = arith.constant 0 : i32
    %c0_i32_2 = arith.constant 0 : i32
    return %c0_i32, %c0_i32_0, %c0_i32_1 : i32, i32, i32
  }
  func.func @transform_2(%arg0: i32) -> (i32, i32) {
    %c0_i32 = arith.constant 0 : i32
    %c0_i32_0 = arith.constant 0 : i32
    %c0_i32_1 = arith.constant 0 : i32
    return %c0_i32, %c0_i32_0 : i32, i32
  }
  func.func @transform_3(%arg0: i32) -> (i32, i32) {
    %c0_i32 = arith.constant 0 : i32
    %c0_i32_0 = arith.constant 0 : i32
    return %arg0, %c0_i32 : i32, i32
  }
}

</mosaic_0001>

<llo_original>
// kernel: tpu_custom_call.1
$region0: #{tpu_custom_call.1}
  #allocation0 [shape = 'u32[]', space=smem, size = 0x4, offset = 0x4, fixed_abs, tag = 'smem constant byte address 0x4 - core index']
  #allocation1 [shape = 'u32[144,128]{1,0:T(1,128)}', space=vmem, size = 0x12000, scoped, tag = 'internal scratch']
  %s0 = inlined_call_operand.hbm [shape: f32[64,128], index: 0, kind: input, shape index: {}]
  %s1 = inlined_call_operand.hbm [shape: f32[3,128,128], index: 1, kind: input, shape index: {}]
  %s2 = inlined_call_operand.vmem [shape: f32[1,128], index: 2, kind: input, shape index: {}]
  %s3 = inlined_call_operand.hbm [shape: f32[64,128], index: 3, kind: output, shape index: {}]
  %s4 = sld [smem:[#allocation0]]
  $region30: #{tpu_custom_call.1} parent=0
    _
  %s6 = ssub.s32 1, %s4
  %s7 = scalar_select 0, %s6, %s4
  $region1: #{tpu_custom_call.1} parent=0
    #allocation2 [shape = 'u8[32768]{0}', space=vmem, size = 0x8000, scoped, tag = 'input window, operand 0, single buffered']
    #allocation3 [shape = 's32[1]{0}', space=sflag, size = 0x4, scoped, tag = 'scoped memory for tpu_custom_call.1']
    #allocation4 [shape = 's32[1]{0}', space=sflag, size = 0x4, scoped, tag = 'scoped memory for tpu_custom_call.1']
    #allocation5 [shape = 'u8[196608]{0}', space=vmem, size = 0x30000, scoped, tag = 'input window, operand 1, single buffered']
    #allocation6 [shape = 's32[1]{0}', space=sflag, size = 0x4, scoped, tag = 'scoped memory for tpu_custom_call.1']
    #allocation7 [shape = 'u8[32768]{0}', space=vmem, size = 0x8000, scoped, tag = 'output window, operand 0, single buffered']
    %8 = vsyncpa [#allocation3], 0
    %9 = vsyncpa [#allocation6], 0
    %10 = vsyncpa [#allocation4], 0
    // Predicated region
    $region2: #{tpu_custom_call.1} parent=1 // pred_check
      _
    $region3: #{tpu_custom_call.1} parent=1 // pred_check_branch
      %12 = sbr.rel (0) target = $region5
    $region4: #{tpu_custom_call.1} parent=1 // pred_region
      %s14 = ssub.s32 1024, 1024
      %15 = vsyncadd [#allocation3], %s14
      %s16 = sshll.u32 [#allocation2], 4
      %s17 = int_to_ptr.vmem [resolvable:$true] %s16
      %22 = dma.hbm_to_vmem [thread:$0]  %s0, 1024, %s17, [#allocation3], 128, 128, 8
    $region5: #{tpu_custom_call.1} parent=1 // pred_fallthru
      _
    // Predicated region
    $region6: #{tpu_custom_call.1} parent=1 // pred_check
      _
    $region7: #{tpu_custom_call.1} parent=1 // pred_check_branch
      %24 = sbr.rel (0) target = $region9
    $region8: #{tpu_custom_call.1} parent=1 // pred_region
      %s26 = ssub.s32 6144, 6144
      %27 = vsyncadd [#allocation6], %s26
      %s28 = sshll.u32 [#allocation5], 4
      %s29 = int_to_ptr.vmem [resolvable:$true] %s28
      %34 = dma.hbm_to_vmem [thread:$0]  %s1, 6144, %s29, [#allocation6], 128, 128, 8
    $region9: #{tpu_custom_call.1} parent=1 // pred_fallthru
      _
    // Predicated region
    $region10: #{tpu_custom_call.1} parent=1 // pred_check
      _
    $region11: #{tpu_custom_call.1} parent=1 // pred_check_branch
      %36 = sbr.rel (0) target = $region13
    $region12: #{tpu_custom_call.1} parent=1 // pred_region
      _
    $region13: #{tpu_custom_call.1} parent=1 // pred_fallthru
      _
    // Predicated region
    $region14: #{tpu_custom_call.1} parent=1 // pred_check
      _
    $region15: #{tpu_custom_call.1} parent=1 // pred_check_branch
      %38 = sbr.rel (0) target = $region17
    $region16: #{tpu_custom_call.1} parent=1 // pred_region
      %39 = dma.done [#allocation3], 1024
    $region17: #{tpu_custom_call.1} parent=1 // pred_fallthru
      _
    // Predicated region
    $region18: #{tpu_custom_call.1} parent=1 // pred_check
      _
    $region19: #{tpu_custom_call.1} parent=1 // pred_check_branch
      %41 = sbr.rel (0) target = $region21
    $region20: #{tpu_custom_call.1} parent=1 // pred_region
      %42 = dma.done [#allocation6], 6144
    $region21: #{tpu_custom_call.1} parent=1 // pred_fallthru
      _
    %v43 = vld [vmem:[#allocation2] sm:$0xff]
    %v44 = vld [vmem:[#allocation2 + $0x8] sm:$0xff]
    %v45 = vld [vmem:[#allocation2 + $0x10] sm:$0xff]
    %v46 = vld [vmem:[#allocation2 + $0x18] sm:$0xff]
    %v47 = vld [vmem:[#allocation2 + $0x20] sm:$0xff]
    %v48 = vld [vmem:[#allocation2 + $0x28] sm:$0xff]
    %v49 = vld [vmem:[#allocation2 + $0x30] sm:$0xff]
    %v50 = vld [vmem:[#allocation2 + $0x38] sm:$0xff]
    %v51 = vld [vmem:[#allocation5] sm:$0xff]
    %v52 = vld [vmem:[#allocation5 + $0x8] sm:$0xff]
    %v53 = vld [vmem:[#allocation5 + $0x10] sm:$0xff]
    %v54 = vld [vmem:[#allocation5 + $0x18] sm:$0xff]
    %v55 = vld [vmem:[#allocation5 + $0x20] sm:$0xff]
    %v56 = vld [vmem:[#allocation5 + $0x28] sm:$0xff]
    %v57 = vld [vmem:[#allocation5 + $0x30] sm:$0xff]
    %v58 = vld [vmem:[#allocation5 + $0x38] sm:$0xff]
    %v59 = vld [vmem:[#allocation5 + $0x40] sm:$0xff]
    %v60 = vld [vmem:[#allocation5 + $0x48] sm:$0xff]
    %v61 = vld [vmem:[#allocation5 + $0x50] sm:$0xff]
    %v62 = vld [vmem:[#allocation5 + $0x58] sm:$0xff]
    %v63 = vld [vmem:[#allocation5 + $0x60] sm:$0xff]
    %v64 = vld [vmem:[#allocation5 + $0x68] sm:$0xff]
    %v65 = vld [vmem:[#allocation5 + $0x70] sm:$0xff]
    %v66 = vld [vmem:[#allocation5 + $0x78] sm:$0xff]
    %67 = vmatprep.subr.mxu0 0.0
    %68 = vmatpush1.msra.mxu0 %v51
    %69 = vmatprep.subr.mxu0 0.0
    %70 = vmatpush1.msra.mxu0 %v52
    %71 = vmatprep.subr.mxu0 0.0
    %72 = vmatpush1.msra.mxu0 %v53
    %73 = vmatprep.subr.mxu0 0.0
    %74 = vmatpush1.msra.mxu0 %v54
    %75 = vmatprep.subr.mxu0 0.0
    %76 = vmatpush1.msra.mxu0 %v55
    %77 = vmatprep.subr.mxu0 0.0
    %78 = vmatpush1.msra.mxu0 %v56
    %79 = vmatprep.subr.mxu0 0.0
    %80 = vmatpush1.msra.mxu0 %v57
    %81 = vmatprep.subr.mxu0 0.0
    %82 = vmatpush1.msra.mxu0 %v58
    %83 = vmatprep.subr.mxu0 0.0
    %84 = vmatpush1.msra.mxu0 %v59
    %85 = vmatprep.subr.mxu0 0.0
    %86 = vmatpush1.msra.mxu0 %v60
    %87 = vmatprep.subr.mxu0 0.0
    %88 = vmatpush1.msra.mxu0 %v61
    %89 = vmatprep.subr.mxu0 0.0
    %90 = vmatpush1.msra.mxu0 %v62
    %91 = vmatprep.subr.mxu0 0.0
    %92 = vmatpush1.msra.mxu0 %v63
    %93 = vmatprep.subr.mxu0 0.0
    %94 = vmatpush1.msra.mxu0 %v64
    %95 = vmatprep.subr.mxu0 0.0
    %96 = vmatpush1.msra.mxu0 %v65
    %97 = vmatprep.subr.mxu0 0.0
    %98 = vmatpush1.msra.mxu0 %v66
    %99 = vmatprep.subr.mxu0 0.0
    %100 = vmatpush1.msra.mxu0 0.0
    %101 = vmatprep.subr.mxu0 0.0
    %102 = vmatpush1.msra.mxu0 0.0
    %103 = vmatprep.subr.mxu0 0.0
    %104 = vmatpush1.msra.mxu0 0.0
    %105 = vmatprep.subr.mxu0 0.0
    %106 = vmatpush1.msra.mxu0 0.0
    %107 = vmatprep.subr.mxu0 0.0
    %108 = vmatpush1.msra.mxu0 0.0
    %109 = vmatprep.subr.mxu0 0.0
    %110 = vmatpush1.msra.mxu0 0.0
    %111 = vmatprep.subr.mxu0 0.0
    %112 = vmatpush1.msra.mxu0 0.0
    %113 = vmatprep.subr.mxu0 0.0
    %114 = vmatpush1.msra.mxu0 0.0
    %115 = vmatprep.subr.mxu0 0.0
    %116 = vmatpush1.msra.mxu0 0.0
    %117 = vmatprep.subr.mxu0 0.0
    %118 = vmatpush1.msra.mxu0 0.0
    %119 = vmatprep.subr.mxu0 0.0
    %120 = vmatpush1.msra.mxu0 0.0
    %121 = vmatprep.subr.mxu0 0.0
    %122 = vmatpush1.msra.mxu0 0.0
    %123 = vmatprep.subr.mxu0 0.0
    %124 = vmatpush1.msra.mxu0 0.0
    %125 = vmatprep.subr.mxu0 0.0
    %126 = vmatpush1.msra.mxu0 0.0
    %127 = vmatprep.subr.mxu0 0.0
    %128 = vmatpush1.msra.mxu0 0.0
    %129 = vmatprep.subr.mxu0 0.0
    %130 = vmatpush1.msra.mxu0 0.0
    %131 = vmatprep.mubr.f32.mxu0 0.0
    %132 = vmatmul.mubr.f32.gmra.mrb[0].mxu0 %v43
    %v133 = vpop.f32.mrb[0].mxu0
    %v134 = vadd.f32 0.0, %v133
    %v135 = vpop.f32.mrb[0].mxu0
    %136 = vmatprep.mubr.f32.mxu0 0.0
    %137 = vmatmul.mubr.f32.gmra.mrb[0].mxu0 %v44
    %v138 = vpop.f32.mrb[0].mxu0
    %v139 = vadd.f32 0.0, %v138
    %v140 = vpop.f32.mrb[0].mxu0
    %141 = vmatprep.mubr.f32.mxu0 0.0
    %142 = vmatmul.mubr.f32.gmra.mrb[0].mxu0 %v45
    %v143 = vpop.f32.mrb[0].mxu0
    %v144 = vadd.f32 0.0, %v143
    %v145 = vpop.f32.mrb[0].mxu0
    %146 = vmatprep.mubr.f32.mxu0 0.0
    %147 = vmatmul.mubr.f32.gmra.mrb[0].mxu0 %v46
    %v148 = vpop.f32.mrb[0].mxu0
    %v149 = vadd.f32 0.0, %v148
    %v150 = vpop.f32.mrb[0].mxu0
    %151 = vmatprep.mubr.f32.mxu0 0.0
    %152 = vmatmul.mubr.f32.gmra.mrb[0].mxu0 %v47
    %v153 = vpop.f32.mrb[0].mxu0
    %v154 = vadd.f32 0.0, %v153
    %v155 = vpop.f32.mrb[0].mxu0
    %156 = vmatprep.mubr.f32.mxu0 0.0
    %157 = vmatmul.mubr.f32.gmra.mrb[0].mxu0 %v48
    %v158 = vpop.f32.mrb[0].mxu0
    %v159 = vadd.f32 0.0, %v158
    %v160 = vpop.f32.mrb[0].mxu0
    %161 = vmatprep.mubr.f32.mxu0 0.0
    %162 = vmatmul.mubr.f32.gmra.mrb[0].mxu0 %v49
    %v163 = vpop.f32.mrb[0].mxu0
    %v164 = vadd.f32 0.0, %v163
    %v165 = vpop.f32.mrb[0].mxu0
    %166 = vmatprep.mubr.f32.mxu0 0.0
    %167 = vmatmul.mubr.f32.gmra.mrb[0].mxu0 %v50
    %v168 = vpop.f32.mrb[0].mxu0
    %v169 = vadd.f32 0.0, %v168
    %v170 = vpop.f32.mrb[0].mxu0
    %171 = vdwg.mxu0
    %s172 = scalar_lea.vmem [#allocation5], 128
    %v173 = vld [vmem:[%s172] sm:$0xff]
    %v174 = vld [vmem:[%s172 + $0x8] sm:$0xff]
    %v175 = vld [vmem:[%s172 + $0x10] sm:$0xff]
    %v176 = vld [vmem:[%s172 + $0x18] sm:$0xff]
    %v177 = vld [vmem:[%s172 + $0x20] sm:$0xff]
    %v178 = vld [vmem:[%s172 + $0x28] sm:$0xff]
    %v179 = vld [vmem:[%s172 + $0x30] sm:$0xff]
    %v180 = vld [vmem:[%s172 + $0x38] sm:$0xff]
    %v181 = vld [vmem:[%s172 + $0x40] sm:$0xff]
    %v182 = vld [vmem:[%s172 + $0x48] sm:$0xff]
    %v183 = vld [vmem:[%s172 + $0x50] sm:$0xff]
    %v184 = vld [vmem:[%s172 + $0x58] sm:$0xff]
    %v185 = vld [vmem:[%s172 + $0x60] sm:$0xff]
    %v186 = vld [vmem:[%s172 + $0x68] sm:$0xff]
    %v187 = vld [vmem:[%s172 + $0x70] sm:$0xff]
    %v188 = vld [vmem:[%s172 + $0x78] sm:$0xff]
    %189 = vmatprep.subr.mxu0 0.0
    %190 = vmatpush1.msra.mxu0 %v173
    %191 = vmatprep.subr.mxu0 0.0
    %192 = vmatpush1.msra.mxu0 %v174
    %193 = vmatprep.subr.mxu0 0.0
    %194 = vmatpush1.msra.mxu0 %v175
    %195 = vmatprep.subr.mxu0 0.0
    %196 = vmatpush1.msra.mxu0 %v176
    %197 = vmatprep.subr.mxu0 0.0
    %198 = vmatpush1.msra.mxu0 %v177
    %199 = vmatprep.subr.mxu0 0.0
    %200 = vmatpush1.msra.mxu0 %v178
    %201 = vmatprep.subr.mxu0 0.0
    %202 = vmatpush1.msra.mxu0 %v179
    %203 = vmatprep.subr.mxu0 0.0
    %204 = vmatpush1.msra.mxu0 %v180
    %205 = vmatprep.subr.mxu0 0.0
    %206 = vmatpush1.msra.mxu0 %v181
    %207 = vmatprep.subr.mxu0 0.0
    %208 = vmatpush1.msra.mxu0 %v182
    %209 = vmatprep.subr.mxu0 0.0
    %210 = vmatpush1.msra.mxu0 %v183
    %211 = vmatprep.subr.mxu0 0.0
    %212 = vmatpush1.msra.mxu0 %v184
    %213 = vmatprep.subr.mxu0 0.0
    %214 = vmatpush1.msra.mxu0 %v185
    %215 = vmatprep.subr.mxu0 0.0
    %216 = vmatpush1.msra.mxu0 %v186
    %217 = vmatprep.subr.mxu0 0.0
    %218 = vmatpush1.msra.mxu0 %v187
    %219 = vmatprep.subr.mxu0 0.0
    %220 = vmatpush1.msra.mxu0 %v188
    %221 = vmatprep.subr.mxu0 0.0
    %222 = vmatpush1.msra.mxu0 0.0
    %223 = vmatprep.subr.mxu0 0.0
    %224 = vmatpush1.msra.mxu0 0.0
    %225 = vmatprep.subr.mxu0 0.0
    %226 = vmatpush1.msra.mxu0 0.0
    %227 = vmatprep.subr.mxu0 0.0
    %228 = vmatpush1.msra.mxu0 0.0
    %229 = vmatprep.subr.mxu0 0.0
    %230 = vmatpush1.msra.mxu0 0.0
    %231 = vmatprep.subr.mxu0 0.0
    %232 = vmatpush1.msra.mxu0 0.0
    %233 = vmatprep.subr.mxu0 0.0
    %234 = vmatpush1.msra.mxu0 0.0
    %235 = vmatprep.subr.mxu0 0.0
    %236 = vmatpush1.msra.mxu0 0.0
    %237 = vmatprep.subr.mxu0 0.0
    %238 = vmatpush1.msra.mxu0 0.0
    %239 = vmatprep.subr.mxu0 0.0
    %240 = vmatpush1.msra.mxu0 0.0
    %241 = vmatprep.subr.mxu0 0.0
    %242 = vmatpush1.msra.mxu0 0.0
    %243 = vmatprep.subr.mxu0 0.0
    %244 = vmatpush1.msra.mxu0 0.0
    %245 = vmatprep.subr.mxu0 0.0
    %246 = vmatpush1.msra.mxu0 0.0
    %247 = vmatprep.subr.mxu0 0.0
    %248 = vmatpush1.msra.mxu0 0.0
    %249 = vmatprep.subr.mxu0 0.0
    %250 = vmatpush1.msra.mxu0 0.0
    %251 = vmatprep.subr.mxu0 0.0
    %252 = vmatpush1.msra.mxu0 0.0
    %253 = vmatprep.mubr.f32.mxu0 0.0
    %254 = vmatmul.mubr.f32.gmra.mrb[0].mxu0 %v43
    %v255 = vpop.f32.mrb[0].mxu0
    %v256 = vadd.f32 0.0, %v255
    %v257 = vpop.f32.mrb[0].mxu0
    %258 = vmatprep.mubr.f32.mxu0 0.0
    %259 = vmatmul.mubr.f32.gmra.mrb[0].mxu0 %v44
    %v260 = vpop.f32.mrb[0].mxu0
    %v261 = vadd.f32 0.0, %v260
    %v262 = vpop.f32.mrb[0].mxu0
    %263 = vmatprep.mubr.f32.mxu0 0.0
    %264 = vmatmul.mubr.f32.gmra.mrb[0].mxu0 %v45
    %v265 = vpop.f32.mrb[0].mxu0
    %v266 = vadd.f32 0.0, %v265
    %v267 = vpop.f32.mrb[0].mxu0
    %268 = vmatprep.mubr.f32.mxu0 0.0
    %269 = vmatmul.mubr.f32.gmra.mrb[0].mxu0 %v46
    %v270 = vpop.f32.mrb[0].mxu0
    %v271 = vadd.f32 0.0, %v270
    %v272 = vpop.f32.mrb[0].mxu0
    %273 = vmatprep.mubr.f32.mxu0 0.0
    %274 = vmatmul.mubr.f32.gmra.mrb[0].mxu0 %v47
    %v275 = vpop.f32.mrb[0].mxu0
    %v276 = vadd.f32 0.0, %v275
    %v277 = vpop.f32.mrb[0].mxu0
    %278 = vmatprep.mubr.f32.mxu0 0.0
    %279 = vmatmul.mubr.f32.gmra.mrb[0].mxu0 %v48
    %v280 = vpop.f32.mrb[0].mxu0
    %v281 = vadd.f32 0.0, %v280
    %v282 = vpop.f32.mrb[0].mxu0
    %283 = vmatprep.mubr.f32.mxu0 0.0
    %284 = vmatmul.mubr.f32.gmra.mrb[0].mxu0 %v49
    %v285 = vpop.f32.mrb[0].mxu0
    %v286 = vadd.f32 0.0, %v285
    %v287 = vpop.f32.mrb[0].mxu0
    %288 = vmatprep.mubr.f32.mxu0 0.0
    %289 = vmatmul.mubr.f32.gmra.mrb[0].mxu0 %v50
    %v290 = vpop.f32.mrb[0].mxu0
    %v291 = vadd.f32 0.0, %v290
    %v292 = vpop.f32.mrb[0].mxu0
    %293 = vdwg.mxu0
    %s294 = scalar_lea.vmem [#allocation5], 256
    %v295 = vld [vmem:[%s294] sm:$0xff]
    %v296 = vld [vmem:[%s294 + $0x8] sm:$0xff]
    %v297 = vld [vmem:[%s294 + $0x10] sm:$0xff]
    %v298 = vld [vmem:[%s294 + $0x18] sm:$0xff]
    %v299 = vld [vmem:[%s294 + $0x20] sm:$0xff]
    %v300 = vld [vmem:[%s294 + $0x28] sm:$0xff]
    %v301 = vld [vmem:[%s294 + $0x30] sm:$0xff]
    %v302 = vld [vmem:[%s294 + $0x38] sm:$0xff]
    %v303 = vld [vmem:[%s294 + $0x40] sm:$0xff]
    %v304 = vld [vmem:[%s294 + $0x48] sm:$0xff]
    %v305 = vld [vmem:[%s294 + $0x50] sm:$0xff]
    %v306 = vld [vmem:[%s294 + $0x58] sm:$0xff]
    %v307 = vld [vmem:[%s294 + $0x60] sm:$0xff]
    %v308 = vld [vmem:[%s294 + $0x68] sm:$0xff]
    %v309 = vld [vmem:[%s294 + $0x70] sm:$0xff]
    %v310 = vld [vmem:[%s294 + $0x78] sm:$0xff]
    %311 = vmatprep.subr.mxu0 0.0
    %312 = vmatpush1.msra.mxu0 %v295
    %313 = vmatprep.subr.mxu0 0.0
    %314 = vmatpush1.msra.mxu0 %v296
    %315 = vmatprep.subr.mxu0 0.0
    %316 = vmatpush1.msra.mxu0 %v297
    %317 = vmatprep.subr.mxu0 0.0
    %318 = vmatpush1.msra.mxu0 %v298
    %319 = vmatprep.subr.mxu0 0.0
    %320 = vmatpush1.msra.mxu0 %v299
    %321 = vmatprep.subr.mxu0 0.0
    %322 = vmatpush1.msra.mxu0 %v300
    %323 = vmatprep.subr.mxu0 0.0
    %324 = vmatpush1.msra.mxu0 %v301
    %325 = vmatprep.subr.mxu0 0.0
    %326 = vmatpush1.msra.mxu0 %v302
    %327 = vmatprep.subr.mxu0 0.0
    %328 = vmatpush1.msra.mxu0 %v303
    %329 = vmatprep.subr.mxu0 0.0
    %330 = vmatpush1.msra.mxu0 %v304
    %331 = vmatprep.subr.mxu0 0.0
    %332 = vmatpush1.msra.mxu0 %v305
    %333 = vmatprep.subr.mxu0 0.0
    %334 = vmatpush1.msra.mxu0 %v306
    %335 = vmatprep.subr.mxu0 0.0
    %336 = vmatpush1.msra.mxu0 %v307
    %337 = vmatprep.subr.mxu0 0.0
    %338 = vmatpush1.msra.mxu0 %v308
    %339 = vmatprep.subr.mxu0 0.0
    %340 = vmatpush1.msra.mxu0 %v309
    %341 = vmatprep.subr.mxu0 0.0
    %342 = vmatpush1.msra.mxu0 %v310
    %343 = vmatprep.subr.mxu0 0.0
    %344 = vmatpush1.msra.mxu0 0.0
    %345 = vmatprep.subr.mxu0 0.0
    %346 = vmatpush1.msra.mxu0 0.0
    %347 = vmatprep.subr.mxu0 0.0
    %348 = vmatpush1.msra.mxu0 0.0
    %349 = vmatprep.subr.mxu0 0.0
    %350 = vmatpush1.msra.mxu0 0.0
    %351 = vmatprep.subr.mxu0 0.0
    %352 = vmatpush1.msra.mxu0 0.0
    %353 = vmatprep.subr.mxu0 0.0
    %354 = vmatpush1.msra.mxu0 0.0
    %355 = vmatprep.subr.mxu0 0.0
    %356 = vmatpush1.msra.mxu0 0.0
    %357 = vmatprep.subr.mxu0 0.0
    %358 = vmatpush1.msra.mxu0 0.0
    %359 = vmatprep.subr.mxu0 0.0
    %360 = vmatpush1.msra.mxu0 0.0
    %361 = vmatprep.subr.mxu0 0.0
    %362 = vmatpush1.msra.mxu0 0.0
    %363 = vmatprep.subr.mxu0 0.0
    %364 = vmatpush1.msra.mxu0 0.0
    %365 = vmatprep.subr.mxu0 0.0
    %366 = vmatpush1.msra.mxu0 0.0
    %367 = vmatprep.subr.mxu0 0.0
    %368 = vmatpush1.msra.mxu0 0.0
    %369 = vmatprep.subr.mxu0 0.0
    %370 = vmatpush1.msra.mxu0 0.0
    %371 = vmatprep.subr.mxu0 0.0
    %372 = vmatpush1.msra.mxu0 0.0
    %373 = vmatprep.subr.mxu0 0.0
    %374 = vmatpush1.msra.mxu0 0.0
    %375 = vmatprep.mubr.f32.mxu0 0.0
    %376 = vmatmul.mubr.f32.gmra.mrb[0].mxu0 %v43
    %v377 = vpop.f32.mrb[0].mxu0
    %v378 = vadd.f32 0.0, %v377
    %v379 = vpop.f32.mrb[0].mxu0
    %380 = vmatprep.mubr.f32.mxu0 0.0
    %381 = vmatmul.mubr.f32.gmra.mrb[0].mxu0 %v44
    %v382 = vpop.f32.mrb[0].mxu0
    %v383 = vadd.f32 0.0, %v382
    %v384 = vpop.f32.mrb[0].mxu0
    %385 = vmatprep.mubr.f32.mxu0 0.0
    %386 = vmatmul.mubr.f32.gmra.mrb[0].mxu0 %v45
    %v387 = vpop.f32.mrb[0].mxu0
    %v388 = vadd.f32 0.0, %v387
    %v389 = vpop.f32.mrb[0].mxu0
    %390 = vmatprep.mubr.f32.mxu0 0.0
    %391 = vmatmul.mubr.f32.gmra.mrb[0].mxu0 %v46
    %v392 = vpop.f32.mrb[0].mxu0
    %v393 = vadd.f32 0.0, %v392
    %v394 = vpop.f32.mrb[0].mxu0
    %395 = vmatprep.mubr.f32.mxu0 0.0
    %396 = vmatmul.mubr.f32.gmra.mrb[0].mxu0 %v47
    %v397 = vpop.f32.mrb[0].mxu0
    %v398 = vadd.f32 0.0, %v397
    %v399 = vpop.f32.mrb[0].mxu0
    %400 = vmatprep.mubr.f32.mxu0 0.0
    %401 = vmatmul.mubr.f32.gmra.mrb[0].mxu0 %v48
    %v402 = vpop.f32.mrb[0].mxu0
    %v403 = vadd.f32 0.0, %v402
    %v404 = vpop.f32.mrb[0].mxu0
    %405 = vmatprep.mubr.f32.mxu0 0.0
    %406 = vmatmul.mubr.f32.gmra.mrb[0].mxu0 %v49
    %v407 = vpop.f32.mrb[0].mxu0
    %v408 = vadd.f32 0.0, %v407
    %v409 = vpop.f32.mrb[0].mxu0
    %410 = vmatprep.mubr.f32.mxu0 0.0
    %411 = vmatmul.mubr.f32.gmra.mrb[0].mxu0 %v50
    %v412 = vpop.f32.mrb[0].mxu0
    %v413 = vadd.f32 0.0, %v412
    %v414 = vpop.f32.mrb[0].mxu0
    %415 = vdwg.mxu0
    %v416 = vlaneseq
    %v417 = vshrl.u32 %v416, 7
    %v418 = vadd.s32 %v417, 8
    %v419 = vadd.s32 %v417, 16
    %v420 = vadd.s32 %v417, 24
    %v421 = vadd.s32 %v417, 32
    %v422 = vadd.s32 %v417, 40
    %v423 = vadd.s32 %v417, 48
    %v424 = vadd.s32 %v417, 56
    %vm425 = vcmp.lt.s32.totalorder %v417, 0
    %v426 = vsub.s32 0, %v417
    %v427 = vsel %vm425, %v426, %v417
    %v428 = vshrl.u32 %v427, 5
    %v429 = vand.u32 %v427, 31
    %v430 = vsub.s32 0, %v429
    %v431 = vsel %vm425, %v430, %v429
    %vm432 = vcmp.lt.s32.totalorder %v418, 0
    %v433 = vsub.s32 0, %v418
    %v434 = vsel %vm432, %v433, %v418
    %v435 = vshrl.u32 %v434, 5
    %v436 = vand.u32 %v434, 31
    %v437 = vsub.s32 0, %v436
    %v438 = vsel %vm432, %v437, %v436
    %vm439 = vcmp.lt.s32.totalorder %v419, 0
    %v440 = vsub.s32 0, %v419
    %v441 = vsel %vm439, %v440, %v419
    %v442 = vshrl.u32 %v441, 5
    %v443 = vand.u32 %v441, 31
    %v444 = vsub.s32 0, %v443
    %v445 = vsel %vm439, %v444, %v443
    %vm446 = vcmp.lt.s32.totalorder %v420, 0
    %v447 = vsub.s32 0, %v420
    %v448 = vsel %vm446, %v447, %v420
    %v449 = vshrl.u32 %v448, 5
    %v450 = vand.u32 %v448, 31
    %v451 = vsub.s32 0, %v450
    %v452 = vsel %vm446, %v451, %v450
    %vm453 = vcmp.lt.s32.totalorder %v421, 0
    %v454 = vsub.s32 0, %v421
    %v455 = vsel %vm453, %v454, %v421
    %v456 = vshrl.u32 %v455, 5
    %v457 = vand.u32 %v455, 31
    %v458 = vsub.s32 0, %v457
    %v459 = vsel %vm453, %v458, %v457
    %vm460 = vcmp.lt.s32.totalorder %v422, 0
    %v461 = vsub.s32 0, %v422
    %v462 = vsel %vm460, %v461, %v422
    %v463 = vshrl.u32 %v462, 5
    %v464 = vand.u32 %v462, 31
    %v465 = vsub.s32 0, %v464
    %v466 = vsel %vm460, %v465, %v464
    %vm467 = vcmp.lt.s32.totalorder %v423, 0
    %v468 = vsub.s32 0, %v423
    %v469 = vsel %vm467, %v468, %v423
    %v470 = vshrl.u32 %v469, 5
    %v471 = vand.u32 %v469, 31
    %v472 = vsub.s32 0, %v471
    %v473 = vsel %vm467, %v472, %v471
    %vm474 = vcmp.lt.s32.totalorder %v424, 0
    %v475 = vsub.s32 0, %v424
    %v476 = vsel %vm474, %v475, %v424
    %v477 = vshrl.u32 %v476, 5
    %v478 = vand.u32 %v476, 31
    %v479 = vsub.s32 0, %v478
    %v480 = vsel %vm474, %v479, %v478
    %vm481 = vcmp.ne.s32.totalorder %v431, 0
    %vm482 = vcmp.ne.s32.totalorder %v438, 0
    %vm483 = vcmp.ne.s32.totalorder %v445, 0
    %vm484 = vcmp.ne.s32.totalorder %v452, 0
    %vm485 = vcmp.ne.s32.totalorder %v459, 0
    %vm486 = vcmp.ne.s32.totalorder %v466, 0
    %vm487 = vcmp.ne.s32.totalorder %v473, 0
    %vm488 = vcmp.ne.s32.totalorder %v480, 0
    %vm489 = vcmp.lt.s32.totalorder %v431, 0
    %vm490 = vcmp.lt.s32.totalorder %v438, 0
    %vm491 = vcmp.lt.s32.totalorder %v445, 0
    %vm492 = vcmp.lt.s32.totalorder %v452, 0
    %vm493 = vcmp.lt.s32.totalorder %v459, 0
    %vm494 = vcmp.lt.s32.totalorder %v466, 0
    %vm495 = vcmp.lt.s32.totalorder %v473, 0
    %vm496 = vcmp.lt.s32.totalorder %v480, 0
    %vm497 = vmand %vm489, %vm481
    %vm498 = vmand %vm490, %vm482
    %vm499 = vmand %vm491, %vm483
    %vm500 = vmand %vm492, %vm484
    %vm501 = vmand %vm493, %vm485
    %vm502 = vmand %vm494, %vm486
    %vm503 = vmand %vm495, %vm487
    %vm504 = vmand %vm496, %vm488
    %v505 = vadd.s32 %v431, 32
    %v506 = vadd.s32 %v438, 32
    %v507 = vadd.s32 %v445, 32
    %v508 = vadd.s32 %v452, 32
    %v509 = vadd.s32 %v459, 32
    %v510 = vadd.s32 %v466, 32
    %v511 = vadd.s32 %v473, 32
    %v512 = vadd.s32 %v480, 32
    %v513 = vsel %vm497, %v505, %v431
    %v514 = vsel %vm498, %v506, %v438
    %v515 = vsel %vm499, %v507, %v445
    %v516 = vsel %vm500, %v508, %v452
    %v517 = vsel %vm501, %v509, %v459
    %v518 = vsel %vm502, %v510, %v466
    %v519 = vsel %vm503, %v511, %v473
    %v520 = vsel %vm504, %v512, %v480
    %vm521 = vcmp.eq.s32.totalorder %v513, 0
    %vm522 = vcmp.eq.s32.totalorder %v514, 0
    %vm523 = vcmp.eq.s32.totalorder %v515, 0
    %vm524 = vcmp.eq.s32.totalorder %v516, 0
    %vm525 = vcmp.eq.s32.totalorder %v517, 0
    %vm526 = vcmp.eq.s32.totalorder %v518, 0
    %vm527 = vcmp.eq.s32.totalorder %v519, 0
    %vm528 = vcmp.eq.s32.totalorder %v520, 0
    %v529 = vrot.slane %v134, 7
    %v530 = vrot.slane %v139, 7
    %v531 = vrot.slane %v144, 7
    %v532 = vrot.slane %v149, 7
    %v533 = vrot.slane %v154, 7
    %v534 = vrot.slane %v159, 7
    %v535 = vrot.slane %v164, 7
    %v536 = vrot.slane %v169, 7
    %vm537 = vcmp.lt.s32.totalorder %v417, 1
    %v538 = vsel %vm537, %v535, %v536
    %v539 = vsel %vm537, %v534, %v535
    %v540 = vsel %vm537, %v533, %v534
    %v541 = vsel %vm537, %v532, %v533
    %v542 = vsel %vm537, %v531, %v532
    %v543 = vsel %vm537, %v530, %v531
    %v544 = vsel %vm537, %v529, %v530
    %v545 = vsel %vm537, %v536, %v529
    %v546 = vsel %vm521, 0.0, %v545
    %v547 = vsel %vm522, 0.0, %v544
    %v548 = vsel %vm523, 0.0, %v543
    %v549 = vsel %vm524, 0.0, %v542
    %v550 = vsel %vm525, 0.0, %v541
    %v551 = vsel %vm526, 0.0, %v540
    %v552 = vsel %vm527, 0.0, %v539
    %v553 = vsel %vm528, 0.0, %v538
    %vm554 = vcmp.eq.s32.totalorder %v513, 31
    %vm555 = vcmp.eq.s32.totalorder %v514, 31
    %vm556 = vcmp.eq.s32.totalorder %v515, 31
    %vm557 = vcmp.eq.s32.totalorder %v516, 31
    %vm558 = vcmp.eq.s32.totalorder %v517, 31
    %vm559 = vcmp.eq.s32.totalorder %v518, 31
    %vm560 = vcmp.eq.s32.totalorder %v519, 31
    %vm561 = vcmp.eq.s32.totalorder %v520, 31
    %v562 = vrot.slane %v378, 1
    %v563 = vrot.slane %v383, 1
    %v564 = vrot.slane %v388, 1
    %v565 = vrot.slane %v393, 1
    %v566 = vrot.slane %v398, 1
    %v567 = vrot.slane %v403, 1
    %v568 = vrot.slane %v408, 1
    %v569 = vrot.slane %v413, 1
    %vm570 = vcmp.lt.s32.totalorder %v417, 7
    %v571 = vsel %vm570, %v568, %v569
    %v572 = vsel %vm570, %v567, %v568
    %v573 = vsel %vm570, %v566, %v567
    %v574 = vsel %vm570, %v565, %v566
    %v575 = vsel %vm570, %v564, %v565
    %v576 = vsel %vm570, %v563, %v564
    %v577 = vsel %vm570, %v562, %v563
    %v578 = vsel %vm570, %v569, %v562
    %v579 = vsel %vm554, 0.0, %v577
    %v580 = vsel %vm555, 0.0, %v576
    %v581 = vsel %vm556, 0.0, %v575
    %v582 = vsel %vm557, 0.0, %v574
    %v583 = vsel %vm558, 0.0, %v573
    %v584 = vsel %vm559, 0.0, %v572
    %v585 = vsel %vm560, 0.0, %v571
    %v586 = vsel %vm561, 0.0, %v578
    %v587 = vadd.f32 %v546, %v256
    %v588 = vadd.f32 %v547, %v261
    %v589 = vadd.f32 %v548, %v266
    %v590 = vadd.f32 %v549, %v271
    %v591 = vadd.f32 %v550, %v276
    %v592 = vadd.f32 %v551, %v281
    %v593 = vadd.f32 %v552, %v286
    %v594 = vadd.f32 %v553, %v291
    %v595 = vadd.f32 %v587, %v579
    %v596 = vadd.f32 %v588, %v580
    %v597 = vadd.f32 %v589, %v581
    %v598 = vadd.f32 %v590, %v582
    %v599 = vadd.f32 %v591, %v583
    %v600 = vadd.f32 %v592, %v584
    %v601 = vadd.f32 %v593, %v585
    %v602 = vadd.f32 %v594, %v586
    %v603 = vld [vmem:[%s2] sm:$0x1]
    %v605 = vlaneseq
    %v606 = vshrl.u32 %v605, 7
    %v607 = vsub.s32 0, %v606
    %v608 = vrot.slane %v603, %v607
    %v610 = vadd.f32 %v595, %v608
    %v611 = vadd.f32 %v596, %v608
    %v612 = vadd.f32 %v597, %v608
    %v613 = vadd.f32 %v598, %v608
    %v614 = vadd.f32 %v599, %v608
    %v615 = vadd.f32 %v600, %v608
    %v616 = vadd.f32 %v601, %v608
    %v617 = vadd.f32 %v602, %v608
    %618 = vst [vmem:[#allocation7] sm:$0xff] %v610
    %619 = vst [vmem:[#allocation7 + $0x8] sm:$0xff] %v611
    %620 = vst [vmem:[#allocation7 + $0x10] sm:$0xff] %v612
    %621 = vst [vmem:[#allocation7 + $0x18] sm:$0xff] %v613
    %622 = vst [vmem:[#allocation7 + $0x20] sm:$0xff] %v614
    %623 = vst [vmem:[#allocation7 + $0x28] sm:$0xff] %v615
    %624 = vst [vmem:[#allocation7 + $0x30] sm:$0xff] %v616
    %625 = vst [vmem:[#allocation7 + $0x38] sm:$0xff] %v617
    // Predicated region
    $region22: #{tpu_custom_call.1} parent=1 // pred_check
      _
    $region23: #{tpu_custom_call.1} parent=1 // pred_check_branch
      %627 = sbr.rel (0) target = $region25
    $region24: #{tpu_custom_call.1} parent=1 // pred_region
      %s629 = ssub.s32 1024, 1024
      %630 = vsyncadd [#allocation4], %s629
      %s631 = sshll.u32 [#allocation7], 4
      %s632 = int_to_ptr.vmem [resolvable:$true] %s631
      %637 = dma.vmem_to_hbm [thread:$0]  %s632, 1024, %s3, [#allocation4], 128, 128, 8
    $region25: #{tpu_custom_call.1} parent=1 // pred_fallthru
      _
    // Predicated region
    $region26: #{tpu_custom_call.1} parent=1 // pred_check
      _
    $region27: #{tpu_custom_call.1} parent=1 // pred_check_branch
      %639 = sbr.rel (0) target = $region29
    $region28: #{tpu_custom_call.1} parent=1 // pred_region
      %640 = dma.done [#allocation4], 1024
    $region29: #{tpu_custom_call.1} parent=1 // pred_fallthru
      _
    %641 = vsyncpa [#allocation3], 1
    %642 = vsyncpa [#allocation6], 1
    %643 = vsyncpa [#allocation4], 1

</llo_original>
